<compile_context>
chip_gen: v5e
topology: v5e:2x2
jax: 0.10.0
libtpu: 0.0.40
codegen_flags: <defaults>
</compile_context>

<pallas_src>
import functools

import jax
import jax.numpy as jnp
from jax.experimental import pallas as pl
from jax.experimental.pallas import tpu as pltpu

EPS = 1e-5        # PyTorch BatchNorm1d default eps
LANE = 128        # TPU lane width: every feature axis lives in one lane tile
MAX_LAYERS = 8    # bias slab rows (one sublane tile)


def mlp_kernel(x_ref, w_ref, b_ref, o_ref, *, num_hidden):
    """x_ref: (B, 128) f32 activations (features zero-padded to 128 lanes).
    w_ref: (128, (num_hidden+1)*128) packed weights; layer i occupies lanes
           [i*128, (i+1)*128), zero-padded outside its (in, out) block.
    b_ref: (8, 128) packed biases; row i = bias of layer i (zero-padded).
    o_ref: (B, 128) lane-dense padded output (valid columns sliced outside)."""
    x = x_ref[...]                                   # (B, 128) f32
    inv_n = 1.0 / x.shape[0]                         # static batch size
    biases = b_ref[...]                              # (8, 128): tiny, load once

    for i in range(num_hidden):
        w = w_ref[:, i * LANE:(i + 1) * LANE]        # (128, 128) static tile slice
        b = biases[i:i + 1, :]                       # (1, 128)

        # ---- training-mode BN statistics (single pass, biased variance) ----
        mean = jnp.sum(x, axis=0, keepdims=True) * inv_n        # (1, 128)
        ex2 = jnp.sum(x * x, axis=0, keepdims=True) * inv_n     # (1, 128)
        invstd = jax.lax.rsqrt(ex2 - mean * mean + EPS)         # EUP rsqrt

        # ---- BN -> Linear -> ReLU (one MXU matmul per hidden layer) ----
        xn = (x - mean) * invstd                                 # (B, 128) VPU
        h = jnp.dot(xn, w, preferred_element_type=jnp.float32) + b
        x = jnp.maximum(h, 0.0)                                  # ReLU

    # ---- output layer: plain Linear (no BN / ReLU) ----
    wo = w_ref[:, num_hidden * LANE:(num_hidden + 1) * LANE]
    bo = biases[num_hidden:num_hidden + 1, :]
    o_ref[...] = jnp.dot(x, wo, preferred_element_type=jnp.float32) + bo


def channel_estimation_forward(x, params):
    """x: (B, input_dim) f32 with B > 1 (BatchNorm needs batch statistics).
    params: [(W0,b0), ..., (W_hid,b_hid), (W_out,b_out)], W: (in, out), b: (1, out)."""
    batch, input_dim = x.shape
    num_layers = len(params)
    num_hidden = num_layers - 1
    out_dim = params[-1][0].shape[1]

    assert all(w.shape[0] <= LANE and w.shape[1] <= LANE for w, _ in params), \
        "this kernel keeps every feature axis inside a single 128-lane tile"
    assert num_layers <= MAX_LAYERS, "bias slab holds up to 8 layers"

    # ---- pack operands into lane-padded slabs (3 input DMAs instead of 9) ----
    x_pad = jnp.zeros((batch, LANE), jnp.float32).at[:, :input_dim].set(x)

    w_slab = jnp.zeros((LANE, num_layers * LANE), jnp.float32)
    b_slab = jnp.zeros((MAX_LAYERS, LANE), jnp.float32)
    for i, (w, b) in enumerate(params):
        fi, fo = w.shape
        w_slab = w_slab.at[:fi, i * LANE:i * LANE + fo].set(w)
        b_slab = b_slab.at[i, :fo].set(b.reshape(-1))

    # Small problem: everything resident in VMEM, single kernel invocation.
    vmem = pl.BlockSpec(memory_space=pltpu.MemorySpace.VMEM)
    y_pad = pl.pallas_call(
        functools.partial(mlp_kernel, num_hidden=num_hidden),
        out_shape=jax.ShapeDtypeStruct((batch, LANE), jnp.float32),
        in_specs=[vmem, vmem, vmem],
        out_specs=vmem,
    )(x_pad, w_slab, b_slab)
    # Slice the valid output features outside the kernel (keeps the in-kernel
    # store lane-dense / unmasked).
    return y_pad[:, :out_dim]


def init_linear(key, fan_in, fan_out):
    # Deterministic init mimicking PyTorch nn.Linear default U[-1/sqrt(in), 1/sqrt(in)].
    kw, kb = jax.random.split(key)
    bound = 1.0 / float(fan_in) ** 0.5
    w = jax.random.uniform(kw, (fan_in, fan_out), jnp.float32, -bound, bound)
    b = jax.random.uniform(kb, (1, fan_out), jnp.float32, -bound, bound)
    return w, b


def _batch_norm_train(x):
    # Faithful original math for the reference: two-pass, biased variance.
    mean = jnp.mean(x, axis=0, keepdims=True)
    var = jnp.mean((x - mean) * (x - mean), axis=0, keepdims=True)
    return (x - mean) * jax.lax.rsqrt(var + EPS)


def reference_forward(x, params):
    # Pure-JAX reference (un-fused) for the correctness check.
    h = x
    for w, b in params[:-1]:
        h = jnp.maximum(_batch_norm_train(h) @ w + b, 0.0)
    wo, bo = params[-1]
    return h @ wo + bo


if __name__ == "__main__":
    # Small shapes consistent with the module's forward
    # (input_dim -> 3 hidden layers -> output_dim).
    batch, input_dim, output_dim = 8, 32, 16
    node_counts = [32, 32, 32]

    key = jax.random.PRNGKey(0)
    keys = jax.random.split(key, len(node_counts) + 2)

    params = []
    prev = input_dim
    for i, h in enumerate(node_counts):
        params.append(init_linear(keys[i], prev, h))
        prev = h
    params.append(init_linear(keys[len(node_counts)], prev, output_dim))

    x = jax.random.normal(keys[-1], (batch, input_dim), jnp.float32)

    fwd = jax.jit(channel_estimation_forward)
    out = jax.block_until_ready(fwd(x, params))

    ref = reference_forward(x, params)
    assert out.shape == (batch, output_dim)
    assert jnp.allclose(out, ref, atol=1e-4, rtol=1e-4)

    print("KERNEL_OK")
</pallas_src>

<mosaic_0001>
module attributes {stable_mosaic.version = 11 : i64} {
  func.func @mlp_kernel(%arg0: memref<8x128xf32, #tpu.memory_space<vmem>>, %arg1: memref<128x512xf32, #tpu.memory_space<vmem>>, %arg2: memref<8x128xf32, #tpu.memory_space<vmem>>, %arg3: memref<8x128xf32, #tpu.memory_space<vmem>>) attributes {dimension_semantics = [], scalar_prefetch = 0 : i64, scratch_operands = 0 : i64, tpu.core_type = #tpu.core_type<tc>} {
    %c0 = arith.constant 0 : index
    %c0_0 = arith.constant 0 : index
    %0 = vector.load %arg0[%c0, %c0_0] : memref<8x128xf32, #tpu.memory_space<vmem>>, vector<8x128xf32>
    %c0_1 = arith.constant 0 : index
    %c0_2 = arith.constant 0 : index
    %1 = vector.load %arg2[%c0_1, %c0_2] : memref<8x128xf32, #tpu.memory_space<vmem>>, vector<8x128xf32>
    %c0_3 = arith.constant 0 : index
    %c0_4 = arith.constant 0 : index
    %2 = vector.load %arg1[%c0_3, %c0_4] : memref<128x512xf32, #tpu.memory_space<vmem>>, vector<128x128xf32>
    %3 = vector.extract_strided_slice %1 {offsets = [0, 0], sizes = [1, 128], strides = [1, 1]} : vector<8x128xf32> to vector<1x128xf32>
    %cst = arith.constant dense<0.000000e+00> : vector<128xf32>
    %4 = vector.multi_reduction <add>, %0, %cst [0] : vector<8x128xf32> to vector<128xf32>
    %5 = vector.shape_cast %4 : vector<128xf32> to vector<1x128xf32>
    %cst_5 = arith.constant 1.250000e-01 : f32
    %6 = vector.broadcast %cst_5 : f32 to vector<1x128xf32>
    %7 = arith.mulf %5, %6 : vector<1x128xf32>
    %8 = arith.mulf %0, %0 : vector<8x128xf32>
    %cst_6 = arith.constant dense<0.000000e+00> : vector<128xf32>
    %9 = vector.multi_reduction <add>, %8, %cst_6 [0] : vector<8x128xf32> to vector<128xf32>
    %10 = vector.shape_cast %9 : vector<128xf32> to vector<1x128xf32>
    %cst_7 = arith.constant 1.250000e-01 : f32
    %11 = vector.broadcast %cst_7 : f32 to vector<1x128xf32>
    %12 = arith.mulf %10, %11 : vector<1x128xf32>
    %13 = arith.mulf %7, %7 : vector<1x128xf32>
    %14 = arith.subf %12, %13 : vector<1x128xf32>
    %cst_8 = arith.constant 9.99999974E-6 : f32
    %15 = vector.broadcast %cst_8 : f32 to vector<1x128xf32>
    %16 = arith.addf %14, %15 : vector<1x128xf32>
    %17 = math.rsqrt %16 : vector<1x128xf32>
    %18 = vector.broadcast %7 : vector<1x128xf32> to vector<8x128xf32>
    %19 = arith.subf %0, %18 : vector<8x128xf32>
    %20 = vector.broadcast %17 : vector<1x128xf32> to vector<8x128xf32>
    %21 = arith.mulf %19, %20 : vector<8x128xf32>
    %cst_9 = arith.constant dense<0.000000e+00> : vector<8x128xf32>
    %22 = tpu.matmul %21, %2, %cst_9 {dimension_numbers = #tpu.dot_dimension_numbers<[1], [0], [0], [1], [0, 0, 1, 1], [], []>} : vector<8x128xf32>, vector<128x128xf32>, vector<8x128xf32> -> vector<8x128xf32>
    %23 = vector.broadcast %3 : vector<1x128xf32> to vector<8x128xf32>
    %24 = arith.addf %22, %23 : vector<8x128xf32>
    %cst_10 = arith.constant 0.000000e+00 : f32
    %25 = vector.broadcast %cst_10 : f32 to vector<8x128xf32>
    %26 = arith.maximumf %24, %25 : vector<8x128xf32>
    %c0_11 = arith.constant 0 : index
    %c128 = arith.constant 128 : index
    %27 = vector.load %arg1[%c0_11, %c128] : memref<128x512xf32, #tpu.memory_space<vmem>>, vector<128x128xf32>
    %28 = vector.extract_strided_slice %1 {offsets = [1, 0], sizes = [1, 128], strides = [1, 1]} : vector<8x128xf32> to vector<1x128xf32>
    %cst_12 = arith.constant dense<0.000000e+00> : vector<128xf32>
    %29 = vector.multi_reduction <add>, %26, %cst_12 [0] : vector<8x128xf32> to vector<128xf32>
    %30 = vector.shape_cast %29 : vector<128xf32> to vector<1x128xf32>
    %cst_13 = arith.constant 1.250000e-01 : f32
    %31 = vector.broadcast %cst_13 : f32 to vector<1x128xf32>
    %32 = arith.mulf %30, %31 : vector<1x128xf32>
    %33 = arith.mulf %26, %26 : vector<8x128xf32>
    %cst_14 = arith.constant dense<0.000000e+00> : vector<128xf32>
    %34 = vector.multi_reduction <add>, %33, %cst_14 [0] : vector<8x128xf32> to vector<128xf32>
    %35 = vector.shape_cast %34 : vector<128xf32> to vector<1x128xf32>
    %cst_15 = arith.constant 1.250000e-01 : f32
    %36 = vector.broadcast %cst_15 : f32 to vector<1x128xf32>
    %37 = arith.mulf %35, %36 : vector<1x128xf32>
    %38 = arith.mulf %32, %32 : vector<1x128xf32>
    %39 = arith.subf %37, %38 : vector<1x128xf32>
    %cst_16 = arith.constant 9.99999974E-6 : f32
    %40 = vector.broadcast %cst_16 : f32 to vector<1x128xf32>
    %41 = arith.addf %39, %40 : vector<1x128xf32>
    %42 = math.rsqrt %41 : vector<1x128xf32>
    %43 = vector.broadcast %32 : vector<1x128xf32> to vector<8x128xf32>
    %44 = arith.subf %26, %43 : vector<8x128xf32>
    %45 = vector.broadcast %42 : vector<1x128xf32> to vector<8x128xf32>
    %46 = arith.mulf %44, %45 : vector<8x128xf32>
    %cst_17 = arith.constant dense<0.000000e+00> : vector<8x128xf32>
    %47 = tpu.matmul %46, %27, %cst_17 {dimension_numbers = #tpu.dot_dimension_numbers<[1], [0], [0], [1], [0, 0, 1, 1], [], []>} : vector<8x128xf32>, vector<128x128xf32>, vector<8x128xf32> -> vector<8x128xf32>
    %48 = vector.broadcast %28 : vector<1x128xf32> to vector<8x128xf32>
    %49 = arith.addf %47, %48 : vector<8x128xf32>
    %cst_18 = arith.constant 0.000000e+00 : f32
    %50 = vector.broadcast %cst_18 : f32 to vector<8x128xf32>
    %51 = arith.maximumf %49, %50 : vector<8x128xf32>
    %c0_19 = arith.constant 0 : index
    %c256 = arith.constant 256 : index
    %52 = vector.load %arg1[%c0_19, %c256] : memref<128x512xf32, #tpu.memory_space<vmem>>, vector<128x128xf32>
    %53 = vector.extract_strided_slice %1 {offsets = [2, 0], sizes = [1, 128], strides = [1, 1]} : vector<8x128xf32> to vector<1x128xf32>
    %cst_20 = arith.constant dense<0.000000e+00> : vector<128xf32>
    %54 = vector.multi_reduction <add>, %51, %cst_20 [0] : vector<8x128xf32> to vector<128xf32>
    %55 = vector.shape_cast %54 : vector<128xf32> to vector<1x128xf32>
    %cst_21 = arith.constant 1.250000e-01 : f32
    %56 = vector.broadcast %cst_21 : f32 to vector<1x128xf32>
    %57 = arith.mulf %55, %56 : vector<1x128xf32>
    %58 = arith.mulf %51, %51 : vector<8x128xf32>
    %cst_22 = arith.constant dense<0.000000e+00> : vector<128xf32>
    %59 = vector.multi_reduction <add>, %58, %cst_22 [0] : vector<8x128xf32> to vector<128xf32>
    %60 = vector.shape_cast %59 : vector<128xf32> to vector<1x128xf32>
    %cst_23 = arith.constant 1.250000e-01 : f32
    %61 = vector.broadcast %cst_23 : f32 to vector<1x128xf32>
    %62 = arith.mulf %60, %61 : vector<1x128xf32>
    %63 = arith.mulf %57, %57 : vector<1x128xf32>
    %64 = arith.subf %62, %63 : vector<1x128xf32>
    %cst_24 = arith.constant 9.99999974E-6 : f32
    %65 = vector.broadcast %cst_24 : f32 to vector<1x128xf32>
    %66 = arith.addf %64, %65 : vector<1x128xf32>
    %67 = math.rsqrt %66 : vector<1x128xf32>
    %68 = vector.broadcast %57 : vector<1x128xf32> to vector<8x128xf32>
    %69 = arith.subf %51, %68 : vector<8x128xf32>
    %70 = vector.broadcast %67 : vector<1x128xf32> to vector<8x128xf32>
    %71 = arith.mulf %69, %70 : vector<8x128xf32>
    %cst_25 = arith.constant dense<0.000000e+00> : vector<8x128xf32>
    %72 = tpu.matmul %71, %52, %cst_25 {dimension_numbers = #tpu.dot_dimension_numbers<[1], [0], [0], [1], [0, 0, 1, 1], [], []>} : vector<8x128xf32>, vector<128x128xf32>, vector<8x128xf32> -> vector<8x128xf32>
    %73 = vector.broadcast %53 : vector<1x128xf32> to vector<8x128xf32>
    %74 = arith.addf %72, %73 : vector<8x128xf32>
    %cst_26 = arith.constant 0.000000e+00 : f32
    %75 = vector.broadcast %cst_26 : f32 to vector<8x128xf32>
    %76 = arith.maximumf %74, %75 : vector<8x128xf32>
    %c0_27 = arith.constant 0 : index
    %c384 = arith.constant 384 : index
    %77 = vector.load %arg1[%c0_27, %c384] : memref<128x512xf32, #tpu.memory_space<vmem>>, vector<128x128xf32>
    %78 = vector.extract_strided_slice %1 {offsets = [3, 0], sizes = [1, 128], strides = [1, 1]} : vector<8x128xf32> to vector<1x128xf32>
    %cst_28 = arith.constant dense<0.000000e+00> : vector<8x128xf32>
    %79 = tpu.matmul %76, %77, %cst_28 {dimension_numbers = #tpu.dot_dimension_numbers<[1], [0], [0], [1], [0, 0, 1, 1], [], []>} : vector<8x128xf32>, vector<128x128xf32>, vector<8x128xf32> -> vector<8x128xf32>
    %80 = vector.broadcast %78 : vector<1x128xf32> to vector<8x128xf32>
    %81 = arith.addf %79, %80 : vector<8x128xf32>
    %c0_29 = arith.constant 0 : index
    %c0_30 = arith.constant 0 : index
    %82 = vector.load %arg3[%c0_29, %c0_30] : memref<8x128xf32, #tpu.memory_space<vmem>>, vector<8x128xf32>
    tpu.vector_store %arg3[%c0_29, %c0_30], %81 {strides = array<i32>} : memref<8x128xf32, #tpu.memory_space<vmem>>, vector<8x128xf32>,
    return
  }
}

</mosaic_0001>

<llo_original>
// kernel: channel_estimation_forward.1
$region0: #{channel_estimation_forward.1}
  #allocation0 [shape = 'u32[]', space=smem, size = 0x4, offset = 0x4, fixed_abs, tag = 'smem constant byte address 0x4 - core index']
  #allocation1 [shape = 'u32[72,128]{1,0:T(1,128)}', space=vmem, size = 0x9000, scoped, tag = 'internal scratch']
  %s0 = inlined_call_operand.vmem [shape: f32[8,128], index: 0, kind: input, shape index: {}]
  %s1 = inlined_call_operand.vmem [shape: f32[128,512], index: 1, kind: input, shape index: {}]
  %s2 = inlined_call_operand.vmem [shape: f32[8,128], index: 2, kind: input, shape index: {}]
  %s3 = inlined_call_operand.hbm [shape: f32[8,128], index: 3, kind: output, shape index: {}]
  %s4 = sld [smem:[#allocation0]]
  $region22: #{channel_estimation_forward.1} parent=0
    _
  %s6 = ssub.s32 1, %s4
  %s7 = scalar_select 0, %s6, %s4
  $region1: #{channel_estimation_forward.1} parent=0
    #allocation2 [shape = 'u8[4096]{0}', space=vmem, size = 0x1000, scoped, tag = 'output window, operand 0, single buffered']
    #allocation3 [shape = 's32[1]{0}', space=sflag, size = 0x4, scoped, tag = 'scoped memory for channel_estimation_forward.1']
    %8 = vsyncpa [#allocation3], 0
    // Predicated region
    $region2: #{channel_estimation_forward.1} parent=1 // pred_check
      _
    $region3: #{channel_estimation_forward.1} parent=1 // pred_check_branch
      %10 = sbr.rel (0) target = $region5
    $region4: #{channel_estimation_forward.1} parent=1 // pred_region
      _
    $region5: #{channel_estimation_forward.1} parent=1 // pred_fallthru
      _
    // Predicated region
    $region6: #{channel_estimation_forward.1} parent=1 // pred_check
      _
    $region7: #{channel_estimation_forward.1} parent=1 // pred_check_branch
      %12 = sbr.rel (0) target = $region9
    $region8: #{channel_estimation_forward.1} parent=1 // pred_region
      _
    $region9: #{channel_estimation_forward.1} parent=1 // pred_fallthru
      _
    // Predicated region
    $region10: #{channel_estimation_forward.1} parent=1 // pred_check
      _
    $region11: #{channel_estimation_forward.1} parent=1 // pred_check_branch
      %14 = sbr.rel (0) target = $region13
    $region12: #{channel_estimation_forward.1} parent=1 // pred_region
      _
    $region13: #{channel_estimation_forward.1} parent=1 // pred_fallthru
      _
    %v15 = vld [vmem:[%s0] sm:$0xff]
    %v16 = vld [vmem:[%s2] sm:$0xff]
    %v17 = vld [vmem:[%s1] sm:$0xff]
    %v18 = vld [vmem:[%s1 + $0x20] sm:$0xff]
    %v19 = vld [vmem:[%s1 + $0x40] sm:$0xff]
    %v20 = vld [vmem:[%s1 + $0x60] sm:$0xff]
    %v21 = vld [vmem:[%s1 + $0x80] sm:$0xff]
    %v22 = vld [vmem:[%s1 + $0xa0] sm:$0xff]
    %v23 = vld [vmem:[%s1 + $0xc0] sm:$0xff]
    %v24 = vld [vmem:[%s1 + $0xe0] sm:$0xff]
    %v25 = vld [vmem:[%s1 + $0x100] sm:$0xff]
    %v26 = vld [vmem:[%s1 + $0x120] sm:$0xff]
    %v27 = vld [vmem:[%s1 + $0x140] sm:$0xff]
    %v28 = vld [vmem:[%s1 + $0x160] sm:$0xff]
    %v29 = vld [vmem:[%s1 + $0x180] sm:$0xff]
    %v30 = vld [vmem:[%s1 + $0x1a0] sm:$0xff]
    %v31 = vld [vmem:[%s1 + $0x1c0] sm:$0xff]
    %v32 = vld [vmem:[%s1 + $0x1e0] sm:$0xff]
    %v33 = vrot.slane %v15, 4
    %v34 = vadd.f32 %v15, %v33
    %v35 = vrot.slane %v34, 2
    %v36 = vadd.f32 %v34, %v35
    %v37 = vrot.slane %v36, 1
    %v38 = vadd.f32 %v36, %v37
    %v39 = vmul.f32 %v38, 0.125
    %v40 = vmul.f32 %v15, %v15
    %v41 = vrot.slane %v40, 4
    %v42 = vadd.f32 %v40, %v41
    %v43 = vrot.slane %v42, 2
    %v44 = vadd.f32 %v42, %v43
    %v45 = vrot.slane %v44, 1
    %v46 = vadd.f32 %v44, %v45
    %v47 = vmul.f32 %v46, 0.125
    %v48 = vmul.f32 %v39, %v39
    %v49 = vsub.f32 %v47, %v48
    %v50 = vadd.f32 %v49, 1e-05
    %v51 = vrsqrt.pop %v50
    %v52 = vmul.f32 %v51, %v50
    %v53 = vmul.f32 %v52, %v51
    %v54 = vmul.f32 0.5, %v53
    %v55 = vsub.f32 1.5, %v54
    %v56 = vmul.f32 %v51, %v55
    %vm57 = vweird.f32 %v50
    %vm58 = vweird.f32 %v51
    %vm59 = vmor %vm57, %vm58
    %v60 = vsel %vm59, %v51, %v56
    %v61 = vsub.f32 %v15, %v39
    %v62 = vmul.f32 %v61, %v60
    %v63 = vperm.slane %v16, 0
    %64 = vmatpush.msra.mxu0 %v32
    %65 = vmatpush.msra.mxu0 %v31
    %66 = vmatpush.msra.mxu0 %v30
    %67 = vmatpush.msra.mxu0 %v29
    %68 = vmatpush.msra.mxu0 %v28
    %69 = vmatpush.msra.mxu0 %v27
    %70 = vmatpush.msra.mxu0 %v26
    %71 = vmatpush.msra.mxu0 %v25
    %72 = vmatpush.msra.mxu0 %v24
    %73 = vmatpush.msra.mxu0 %v23
    %74 = vmatpush.msra.mxu0 %v22
    %75 = vmatpush.msra.mxu0 %v21
    %76 = vmatpush.msra.mxu0 %v20
    %77 = vmatpush.msra.mxu0 %v19
    %78 = vmatpush.msra.mxu0 %v18
    %79 = vmatpush.msra.mxu0 %v17
    %80 = vmatmul.f32.gmra.mxu0 %v62
    %v81 = vpop.f32.mrf.mxu0
    %v82 = vadd.f32 %v63, %v81
    %83 = vdwg.mxu0
    %v84 = vmax.f32 %v82, 0.0
    %v85 = vld [vmem:[%s1 + $0x8] sm:$0xff]
    %v86 = vld [vmem:[%s1 + $0x28] sm:$0xff]
    %v87 = vld [vmem:[%s1 + $0x48] sm:$0xff]
    %v88 = vld [vmem:[%s1 + $0x68] sm:$0xff]
    %v89 = vld [vmem:[%s1 + $0x88] sm:$0xff]
    %v90 = vld [vmem:[%s1 + $0xa8] sm:$0xff]
    %v91 = vld [vmem:[%s1 + $0xc8] sm:$0xff]
    %v92 = vld [vmem:[%s1 + $0xe8] sm:$0xff]
    %v93 = vld [vmem:[%s1 + $0x108] sm:$0xff]
    %v94 = vld [vmem:[%s1 + $0x128] sm:$0xff]
    %v95 = vld [vmem:[%s1 + $0x148] sm:$0xff]
    %v96 = vld [vmem:[%s1 + $0x168] sm:$0xff]
    %v97 = vld [vmem:[%s1 + $0x188] sm:$0xff]
    %v98 = vld [vmem:[%s1 + $0x1a8] sm:$0xff]
    %v99 = vld [vmem:[%s1 + $0x1c8] sm:$0xff]
    %v100 = vld [vmem:[%s1 + $0x1e8] sm:$0xff]
    %v101 = vrot.slane %v84, 4
    %v102 = vadd.f32 %v84, %v101
    %v103 = vrot.slane %v102, 2
    %v104 = vadd.f32 %v102, %v103
    %v105 = vrot.slane %v104, 1
    %v106 = vadd.f32 %v104, %v105
    %v107 = vmul.f32 %v106, 0.125
    %v108 = vmul.f32 %v84, %v84
    %v109 = vrot.slane %v108, 4
    %v110 = vadd.f32 %v108, %v109
    %v111 = vrot.slane %v110, 2
    %v112 = vadd.f32 %v110, %v111
    %v113 = vrot.slane %v112, 1
    %v114 = vadd.f32 %v112, %v113
    %v115 = vmul.f32 %v114, 0.125
    %v116 = vmul.f32 %v107, %v107
    %v117 = vsub.f32 %v115, %v116
    %v118 = vadd.f32 %v117, 1e-05
    %v119 = vrsqrt.pop %v118
    %v120 = vmul.f32 %v119, %v118
    %v121 = vmul.f32 %v120, %v119
    %v122 = vmul.f32 0.5, %v121
    %v123 = vsub.f32 1.5, %v122
    %v124 = vmul.f32 %v119, %v123
    %vm125 = vweird.f32 %v118
    %vm126 = vweird.f32 %v119
    %vm127 = vmor %vm125, %vm126
    %v128 = vsel %vm127, %v119, %v124
    %v129 = vsub.f32 %v84, %v107
    %v130 = vmul.f32 %v129, %v128
    %v131 = vperm.slane %v16, 1
    %132 = vmatpush.msra.mxu0 %v100
    %133 = vmatpush.msra.mxu0 %v99
    %134 = vmatpush.msra.mxu0 %v98
    %135 = vmatpush.msra.mxu0 %v97
    %136 = vmatpush.msra.mxu0 %v96
    %137 = vmatpush.msra.mxu0 %v95
    %138 = vmatpush.msra.mxu0 %v94
    %139 = vmatpush.msra.mxu0 %v93
    %140 = vmatpush.msra.mxu0 %v92
    %141 = vmatpush.msra.mxu0 %v91
    %142 = vmatpush.msra.mxu0 %v90
    %143 = vmatpush.msra.mxu0 %v89
    %144 = vmatpush.msra.mxu0 %v88
    %145 = vmatpush.msra.mxu0 %v87
    %146 = vmatpush.msra.mxu0 %v86
    %147 = vmatpush.msra.mxu0 %v85
    %148 = vmatmul.f32.gmra.mxu0 %v130
    %v149 = vpop.f32.mrf.mxu0
    %v150 = vadd.f32 %v131, %v149
    %151 = vdwg.mxu0
    %v152 = vmax.f32 %v150, 0.0
    %v153 = vld [vmem:[%s1 + $0x10] sm:$0xff]
    %v154 = vld [vmem:[%s1 + $0x30] sm:$0xff]
    %v155 = vld [vmem:[%s1 + $0x50] sm:$0xff]
    %v156 = vld [vmem:[%s1 + $0x70] sm:$0xff]
    %v157 = vld [vmem:[%s1 + $0x90] sm:$0xff]
    %v158 = vld [vmem:[%s1 + $0xb0] sm:$0xff]
    %v159 = vld [vmem:[%s1 + $0xd0] sm:$0xff]
    %v160 = vld [vmem:[%s1 + $0xf0] sm:$0xff]
    %v161 = vld [vmem:[%s1 + $0x110] sm:$0xff]
    %v162 = vld [vmem:[%s1 + $0x130] sm:$0xff]
    %v163 = vld [vmem:[%s1 + $0x150] sm:$0xff]
    %v164 = vld [vmem:[%s1 + $0x170] sm:$0xff]
    %v165 = vld [vmem:[%s1 + $0x190] sm:$0xff]
    %v166 = vld [vmem:[%s1 + $0x1b0] sm:$0xff]
    %v167 = vld [vmem:[%s1 + $0x1d0] sm:$0xff]
    %v168 = vld [vmem:[%s1 + $0x1f0] sm:$0xff]
    %v169 = vrot.slane %v152, 4
    %v170 = vadd.f32 %v152, %v169
    %v171 = vrot.slane %v170, 2
    %v172 = vadd.f32 %v170, %v171
    %v173 = vrot.slane %v172, 1
    %v174 = vadd.f32 %v172, %v173
    %v175 = vmul.f32 %v174, 0.125
    %v176 = vmul.f32 %v152, %v152
    %v177 = vrot.slane %v176, 4
    %v178 = vadd.f32 %v176, %v177
    %v179 = vrot.slane %v178, 2
    %v180 = vadd.f32 %v178, %v179
    %v181 = vrot.slane %v180, 1
    %v182 = vadd.f32 %v180, %v181
    %v183 = vmul.f32 %v182, 0.125
    %v184 = vmul.f32 %v175, %v175
    %v185 = vsub.f32 %v183, %v184
    %v186 = vadd.f32 %v185, 1e-05
    %v187 = vrsqrt.pop %v186
    %v188 = vmul.f32 %v187, %v186
    %v189 = vmul.f32 %v188, %v187
    %v190 = vmul.f32 0.5, %v189
    %v191 = vsub.f32 1.5, %v190
    %v192 = vmul.f32 %v187, %v191
    %vm193 = vweird.f32 %v186
    %vm194 = vweird.f32 %v187
    %vm195 = vmor %vm193, %vm194
    %v196 = vsel %vm195, %v187, %v192
    %v197 = vsub.f32 %v152, %v175
    %v198 = vmul.f32 %v197, %v196
    %v199 = vperm.slane %v16, 2
    %200 = vmatpush.msra.mxu0 %v168
    %201 = vmatpush.msra.mxu0 %v167
    %202 = vmatpush.msra.mxu0 %v166
    %203 = vmatpush.msra.mxu0 %v165
    %204 = vmatpush.msra.mxu0 %v164
    %205 = vmatpush.msra.mxu0 %v163
    %206 = vmatpush.msra.mxu0 %v162
    %207 = vmatpush.msra.mxu0 %v161
    %208 = vmatpush.msra.mxu0 %v160
    %209 = vmatpush.msra.mxu0 %v159
    %210 = vmatpush.msra.mxu0 %v158
    %211 = vmatpush.msra.mxu0 %v157
    %212 = vmatpush.msra.mxu0 %v156
    %213 = vmatpush.msra.mxu0 %v155
    %214 = vmatpush.msra.mxu0 %v154
    %215 = vmatpush.msra.mxu0 %v153
    %216 = vmatmul.f32.gmra.mxu0 %v198
    %v217 = vpop.f32.mrf.mxu0
    %v218 = vadd.f32 %v199, %v217
    %219 = vdwg.mxu0
    %v220 = vmax.f32 %v218, 0.0
    %v221 = vld [vmem:[%s1 + $0x18] sm:$0xff]
    %v222 = vld [vmem:[%s1 + $0x38] sm:$0xff]
    %v223 = vld [vmem:[%s1 + $0x58] sm:$0xff]
    %v224 = vld [vmem:[%s1 + $0x78] sm:$0xff]
    %v225 = vld [vmem:[%s1 + $0x98] sm:$0xff]
    %v226 = vld [vmem:[%s1 + $0xb8] sm:$0xff]
    %v227 = vld [vmem:[%s1 + $0xd8] sm:$0xff]
    %v228 = vld [vmem:[%s1 + $0xf8] sm:$0xff]
    %v229 = vld [vmem:[%s1 + $0x118] sm:$0xff]
    %v230 = vld [vmem:[%s1 + $0x138] sm:$0xff]
    %v231 = vld [vmem:[%s1 + $0x158] sm:$0xff]
    %v232 = vld [vmem:[%s1 + $0x178] sm:$0xff]
    %v233 = vld [vmem:[%s1 + $0x198] sm:$0xff]
    %v234 = vld [vmem:[%s1 + $0x1b8] sm:$0xff]
    %v235 = vld [vmem:[%s1 + $0x1d8] sm:$0xff]
    %v236 = vld [vmem:[%s1 + $0x1f8] sm:$0xff]
    %v237 = vperm.slane %v16, 3
    %238 = vmatpush.msra.mxu0 %v236
    %239 = vmatpush.msra.mxu0 %v235
    %240 = vmatpush.msra.mxu0 %v234
    %241 = vmatpush.msra.mxu0 %v233
    %242 = vmatpush.msra.mxu0 %v232
    %243 = vmatpush.msra.mxu0 %v231
    %244 = vmatpush.msra.mxu0 %v230
    %245 = vmatpush.msra.mxu0 %v229
    %246 = vmatpush.msra.mxu0 %v228
    %247 = vmatpush.msra.mxu0 %v227
    %248 = vmatpush.msra.mxu0 %v226
    %249 = vmatpush.msra.mxu0 %v225
    %250 = vmatpush.msra.mxu0 %v224
    %251 = vmatpush.msra.mxu0 %v223
    %252 = vmatpush.msra.mxu0 %v222
    %253 = vmatpush.msra.mxu0 %v221
    %254 = vmatmul.f32.gmra.mxu0 %v220
    %v255 = vpop.f32.mrf.mxu0
    %v256 = vadd.f32 %v237, %v255
    %257 = vdwg.mxu0
    %258 = vst [vmem:[#allocation2] sm:$0xff] %v256
    // Predicated region
    $region14: #{channel_estimation_forward.1} parent=1 // pred_check
      _
    $region15: #{channel_estimation_forward.1} parent=1 // pred_check_branch
      %260 = sbr.rel (0) target = $region17
    $region16: #{channel_estimation_forward.1} parent=1 // pred_region
      %262 = vsyncadd [#allocation3], 0
      %s264 = sshll.u32 [#allocation2], 4
      %s265 = int_to_ptr.vmem [resolvable:$true] %s264
      %s266 = sshll.u32 %s3, 4
      %s267 = int_to_ptr.hbm [resolvable:$true] %s266
      %269 = dma.vmem_to_hbm [thread:$0]  %s265, 128, %s267, [#allocation3]
    $region17: #{channel_estimation_forward.1} parent=1 // pred_fallthru
      _
    // Predicated region
    $region18: #{channel_estimation_forward.1} parent=1 // pred_check
      _
    $region19: #{channel_estimation_forward.1} parent=1 // pred_check_branch
      %271 = sbr.rel (0) target = $region21
    $region20: #{channel_estimation_forward.1} parent=1 // pred_region
      %273 = dma.done [#allocation3], 128
    $region21: #{channel_estimation_forward.1} parent=1 // pred_fallthru
      _
    %274 = vsyncpa [#allocation3], 1

</llo_original>
